<compile_context>
chip_gen: v5e
topology: v5e:2x2
jax: 0.10.0
libtpu: 0.0.40
codegen_flags: <defaults>
</compile_context>

<pallas_src>
import math
import numpy as np
import jax
import jax.numpy as jnp
from jax.experimental import pallas as pl
from jax.experimental.pallas import tpu as pltpu


def _area_weights(in_size: int, out_size: int) -> np.ndarray:
    """Row-stochastic matrix implementing adaptive_avg_pool1d (mode='area')."""
    w = np.zeros((out_size, in_size), dtype=np.float32)
    for i in range(out_size):
        start = (i * in_size) // out_size
        end = -((-(i + 1) * in_size) // out_size)      # ceil((i+1)*in/out)
        w[i, start:end] = 1.0 / float(end - start)
    return w


def rcnn_transform_forward(images, image_mean, image_std, min_size, max_size,
                           size_divisible=32):
    """images: (B, C, H, W). All images share one size in this synthetic setup."""
    B, C, H, W = images.shape
    out_dtype = (images.dtype if jnp.issubdtype(images.dtype, jnp.floating)
                 else jnp.float32)

    # --- scale-factor logic from GeneralizedRCNNTransform.resize (eval mode) ---
    min_dim = float(min(H, W))
    max_dim = float(max(H, W))
    size = float(min_size[-1])
    scale = size / min_dim
    if max_dim * scale > max_size:
        scale = max_size / max_dim
    Ho = int(math.floor(H * scale))
    Wo = int(math.floor(W * scale))

    # --- batch_images padded extents (multiple of size_divisible) ---
    Hp = int(math.ceil(float(Ho) / size_divisible) * size_divisible)
    Wp = int(math.ceil(float(Wo) / size_divisible) * size_divisible)

    # Pooling matrices, zero-padded to the batched extents so the matmuls emit
    # the padded plane directly (pad rows/cols come out as exact zeros).  bf16
    # operands -> full-rate MXU; valid rows/cols still sum to ~1 (exact for
    # power-of-two averaging windows), keeping the normalize-after-resize rewrite.
    wh_np = np.zeros((Hp, H), dtype=np.float32)
    wh_np[:Ho, :] = _area_weights(H, Ho)
    wwt_np = np.zeros((W, Wp), dtype=np.float32)
    wwt_np[:, :Wo] = _area_weights(W, Wo).T
    wh = jnp.asarray(wh_np, dtype=jnp.bfloat16)       # (Hp, H)
    wwt = jnp.asarray(wwt_np, dtype=jnp.bfloat16)     # (W, Wp)

    inv_std_np = 1.0 / np.asarray(image_std, dtype=np.float32)
    bias_np = -np.asarray(image_mean, dtype=np.float32) * inv_std_np   # -mean/std
    inv_std = jnp.asarray(inv_std_np)                  # (C,) SMEM
    bias = jnp.asarray(bias_np)                        # (C,) SMEM

    # Cheaper contraction order per aspect ratio (both are mathematically equal).
    cost_rows_first = Hp * H * W + Hp * W * Wp          # (Wh @ x) @ Ww^T
    cost_cols_first = H * W * Wp + Hp * H * Wp          # Wh @ (x @ Ww^T)
    rows_first = cost_rows_first <= cost_cols_first

    def kernel(inv_std_ref, bias_ref, x_ref, wh_ref, wwt_ref, o_ref):
        c = pl.program_id(1)
        # Cast input plane to bf16 for full-rate MXU matmuls; accumulate in f32.
        x = x_ref[0, 0].astype(jnp.bfloat16)                               # (H, W)
        if rows_first:
            tmp = jnp.dot(wh_ref[...], x,
                          preferred_element_type=jnp.float32)              # (Hp, W)
            r = jnp.dot(tmp.astype(jnp.bfloat16), wwt_ref[...],
                        preferred_element_type=jnp.float32)                # (Hp, Wp)
        else:
            tmp = jnp.dot(x, wwt_ref[...],
                          preferred_element_type=jnp.float32)              # (H, Wp)
            r = jnp.dot(wh_ref[...], tmp.astype(jnp.bfloat16),
                        preferred_element_type=jnp.float32)                # (Hp, Wp)
        # Post-resize normalization in f32 (exact: valid pooling rows sum to 1),
        # masked so the zero pad region stays exactly zero.
        rid = jax.lax.broadcasted_iota(jnp.int32, (Hp, Wp), 0)
        cid = jax.lax.broadcasted_iota(jnp.int32, (Hp, Wp), 1)
        valid = (rid < Ho) & (cid < Wo)
        out = jnp.where(valid, r * inv_std_ref[c] + bias_ref[c], 0.0)
        # Single full, unmasked store of the padded plane (no zero-fill pass,
        # no masked partial overwrite).
        o_ref[0, 0] = out.astype(o_ref.dtype)

    # Per-step VMEM working set: input double-buffered, bf16 weights single-
    # buffered, output double-buffered, plus f32/bf16 intermediates; 2x headroom.
    in_itemsize = images.dtype.itemsize
    out_itemsize = np.dtype(out_dtype).itemsize
    tmp_elems = Hp * W if rows_first else H * Wp
    need = (2 * H * W * in_itemsize
            + Hp * H * 2 + W * Wp * 2
            + 2 * Hp * Wp * out_itemsize
            + 6 * tmp_elems                 # f32 + bf16 copies of the intermediate
            + 4 * Hp * Wp)                  # f32 result before the output cast
    vmem_limit = int(min(max(2 * need, 32 * 2 ** 20), 96 * 2 ** 20))

    # TODO(synk): for extreme image sizes on v7x (64 MiB VMEM), add an
    # output-row-tile grid axis with scalar-prefetched input-row band offsets
    # (banded x / Wh blocks); at typical detector sizes the bf16 + single-buffered
    # weights keep the full-plane working set within budget.
    batched = pl.pallas_call(
        kernel,
        out_shape=jax.ShapeDtypeStruct((B, C, Hp, Wp), out_dtype),
        grid=(B, C),
        in_specs=[
            pl.BlockSpec(memory_space=pltpu.MemorySpace.SMEM),    # inv_std (C,)
            pl.BlockSpec(memory_space=pltpu.MemorySpace.SMEM),    # bias    (C,)
            pl.BlockSpec((1, 1, H, W), lambda b, c: (b, c, 0, 0)),
            pl.BlockSpec((Hp, H), lambda b, c: (0, 0),
                         pipeline_mode=pl.Buffered(1)),           # constant weights
            pl.BlockSpec((W, Wp), lambda b, c: (0, 0),
                         pipeline_mode=pl.Buffered(1)),
        ],
        out_specs=pl.BlockSpec((1, 1, Hp, Wp), lambda b, c: (b, c, 0, 0)),
        compiler_params=pltpu.CompilerParams(
            dimension_semantics=("parallel", "parallel"),
            vmem_limit_bytes=vmem_limit),
    )(inv_std, bias, images, wh, wwt)

    image_sizes = [(Ho, Wo)] * B
    # TODO(synk): targets (boxes/masks/keypoints resizing) not applicable here;
    # forward is exercised with targets=None, matching the pure-inference path.
    return batched, image_sizes


if __name__ == "__main__":
    key = jax.random.PRNGKey(0)
    B, C, H, W = 2, 4, 16, 16
    images = jax.random.normal(key, (B, C, H, W), dtype=jnp.float32)

    # Deterministic "module parameters" (shapes implied by __init__):
    min_size = (8,)          # -> scale 0.5 for a 16x16 input
    max_size = 32
    image_mean = [0.485, 0.456, 0.406, 0.500]
    image_std = [0.229, 0.224, 0.225, 0.250]

    batched, image_sizes = rcnn_transform_forward(
        images, image_mean, image_std, min_size, max_size)
    batched = jax.block_until_ready(batched)

    # Pure-JAX f32 reference (integer-factor area downsample == 2x2 mean pool),
    # computed in the original normalize-then-resize order.
    mean = jnp.asarray(image_mean, dtype=jnp.float32)[None, :, None, None]
    std = jnp.asarray(image_std, dtype=jnp.float32)[None, :, None, None]
    norm = (images - mean) / std
    Ho, Wo = image_sizes[0]
    ref = norm.reshape(B, C, Ho, H // Ho, Wo, W // Wo).mean(axis=(3, 5))
    ref_padded = jnp.zeros_like(batched).at[:, :, :Ho, :Wo].set(ref)

    assert batched.shape == (B, C, 32, 32), batched.shape
    assert image_sizes == [(Ho, Wo)] * B
    # bf16 matmul operands -> relaxed tolerance vs the f32 reference.
    np.testing.assert_allclose(np.asarray(batched), np.asarray(ref_padded),
                               rtol=2e-2, atol=5e-2)
    print("KERNEL_OK")
</pallas_src>

<mosaic_0001>
module attributes {stable_mosaic.version = 11 : i64} {
  func.func @kernel(%arg0: i32, %arg1: i32, %arg2: memref<4xf32, #tpu.memory_space<smem>>, %arg3: memref<4xf32, #tpu.memory_space<smem>>, %arg4: memref<1x1x16x16xf32, #tpu.memory_space<vmem>>, %arg5: memref<32x16xbf16, #tpu.memory_space<vmem>>, %arg6: memref<16x32xbf16, #tpu.memory_space<vmem>>, %arg7: memref<1x1x32x32xf32, #tpu.memory_space<vmem>>) attributes {dimension_semantics = [#tpu.dimension_semantics<parallel>, #tpu.dimension_semantics<parallel>], iteration_bounds = array<i64: 2, 4>, scalar_prefetch = 0 : i64, scratch_operands = 0 : i64, tpu.core_type = #tpu.core_type<tc>, window_params = [{transform_indices = @transform_0, window_bounds = array<i64: 4>}, {transform_indices = @transform_1, window_bounds = array<i64: 4>}, {transform_indices = @transform_2, window_bounds = array<i64: 1, 1, 16, 16>}, {pipeline_mode = #tpu.pipeline_mode<synchronous>, transform_indices = @transform_3, window_bounds = array<i64: 32, 16>}, {pipeline_mode = #tpu.pipeline_mode<synchronous>, transform_indices = @transform_4, window_bounds = array<i64: 16, 32>}, {transform_indices = @transform_5, window_bounds = array<i64: 1, 1, 32, 32>}]} {
    %c0 = arith.constant 0 : index
    %c0_0 = arith.constant 0 : index
    %c0_1 = arith.constant 0 : index
    %c0_2 = arith.constant 0 : index
    %0 = vector.load %arg4[%c0, %c0_0, %c0_1, %c0_2] : memref<1x1x16x16xf32, #tpu.memory_space<vmem>>, vector<1x1x16x16xf32>
    %1 = vector.shape_cast %0 : vector<1x1x16x16xf32> to vector<16x16xf32>
    %2 = arith.truncf %1 : vector<16x16xf32> to vector<16x16xbf16>
    %c0_3 = arith.constant 0 : index
    %c0_4 = arith.constant 0 : index
    %3 = vector.load %arg5[%c0_3, %c0_4] : memref<32x16xbf16, #tpu.memory_space<vmem>>, vector<32x16xbf16>
    %cst = arith.constant dense<0.000000e+00> : vector<32x16xf32>
    %4 = tpu.matmul %3, %2, %cst {dimension_numbers = #tpu.dot_dimension_numbers<[1], [0], [0], [1], [0, 0, 1, 1], [], []>} : vector<32x16xbf16>, vector<16x16xbf16>, vector<32x16xf32> -> vector<32x16xf32>
    %5 = arith.truncf %4 : vector<32x16xf32> to vector<32x16xbf16>
    %c0_5 = arith.constant 0 : index
    %c0_6 = arith.constant 0 : index
    %6 = vector.load %arg6[%c0_5, %c0_6] : memref<16x32xbf16, #tpu.memory_space<vmem>>, vector<16x32xbf16>
    %cst_7 = arith.constant dense<0.000000e+00> : vector<32x32xf32>
    %7 = tpu.matmul %5, %6, %cst_7 {dimension_numbers = #tpu.dot_dimension_numbers<[1], [0], [0], [1], [0, 0, 1, 1], [], []>} : vector<32x16xbf16>, vector<16x32xbf16>, vector<32x32xf32> -> vector<32x32xf32>
    %8 = tpu.iota {dimensions = array<i32: 0>} : vector<32x32xi32>
    %9 = tpu.iota {dimensions = array<i32: 1>} : vector<32x32xi32>
    %c8_i32 = arith.constant 8 : i32
    %10 = vector.broadcast %c8_i32 : i32 to vector<32x32xi32>
    %11 = arith.cmpi slt, %8, %10 : vector<32x32xi32>
    %c8_i32_8 = arith.constant 8 : i32
    %12 = vector.broadcast %c8_i32_8 : i32 to vector<32x32xi32>
    %13 = arith.cmpi slt, %9, %12 : vector<32x32xi32>
    %14 = arith.andi %11, %13 : vector<32x32xi1>
    %15 = arith.index_cast %arg1 : i32 to index
    %16 = memref.load %arg2[%15] : memref<4xf32, #tpu.memory_space<smem>>
    %17 = vector.broadcast %16 : f32 to vector<32x32xf32>
    %18 = arith.mulf %7, %17 : vector<32x32xf32>
    %19 = arith.index_cast %arg1 : i32 to index
    %20 = memref.load %arg3[%19] : memref<4xf32, #tpu.memory_space<smem>>
    %21 = vector.broadcast %20 : f32 to vector<32x32xf32>
    %22 = arith.addf %18, %21 : vector<32x32xf32>
    %cst_9 = arith.constant 0.000000e+00 : f32
    %23 = vector.broadcast %cst_9 : f32 to vector<32x32xf32>
    %24 = arith.select %14, %22, %23 : vector<32x32xi1>, vector<32x32xf32>
    %c0_10 = arith.constant 0 : index
    %c0_11 = arith.constant 0 : index
    %c0_12 = arith.constant 0 : index
    %c0_13 = arith.constant 0 : index
    %25 = vector.load %arg7[%c0_10, %c0_11, %c0_12, %c0_13] : memref<1x1x32x32xf32, #tpu.memory_space<vmem>>, vector<1x1x32x32xf32>
    %26 = vector.shape_cast %25 : vector<1x1x32x32xf32> to vector<32x32xf32>
    %27 = vector.shape_cast %24 : vector<32x32xf32> to vector<1x1x32x32xf32>
    tpu.vector_store %arg7[%c0_10, %c0_11, %c0_12, %c0_13], %27 {strides = array<i32>} : memref<1x1x32x32xf32, #tpu.memory_space<vmem>>, vector<1x1x32x32xf32>,
    return
  }
  func.func @transform_0(%arg0: i32, %arg1: i32) -> i32 {
    %c0_i32 = arith.constant 0 : i32
    %c0_i32_0 = arith.constant 0 : i32
    return %c0_i32 : i32
  }
  func.func @transform_1(%arg0: i32, %arg1: i32) -> i32 {
    %c0_i32 = arith.constant 0 : i32
    %c0_i32_0 = arith.constant 0 : i32
    return %c0_i32 : i32
  }
  func.func @transform_2(%arg0: i32, %arg1: i32) -> (i32, i32, i32, i32) {
    %c0_i32 = arith.constant 0 : i32
    %c0_i32_0 = arith.constant 0 : i32
    %c0_i32_1 = arith.constant 0 : i32
    return %arg0, %arg1, %c0_i32, %c0_i32_0 : i32, i32, i32, i32
  }
  func.func @transform_3(%arg0: i32, %arg1: i32) -> (i32, i32) {
    %c0_i32 = arith.constant 0 : i32
    %c0_i32_0 = arith.constant 0 : i32
    %c0_i32_1 = arith.constant 0 : i32
    return %c0_i32, %c0_i32_0 : i32, i32
  }
  func.func @transform_4(%arg0: i32, %arg1: i32) -> (i32, i32) {
    %c0_i32 = arith.constant 0 : i32
    %c0_i32_0 = arith.constant 0 : i32
    %c0_i32_1 = arith.constant 0 : i32
    return %c0_i32, %c0_i32_0 : i32, i32
  }
  func.func @transform_5(%arg0: i32, %arg1: i32) -> (i32, i32, i32, i32) {
    %c0_i32 = arith.constant 0 : i32
    %c0_i32_0 = arith.constant 0 : i32
    %c0_i32_1 = arith.constant 0 : i32
    return %arg0, %arg1, %c0_i32, %c0_i32_0 : i32, i32, i32, i32
  }
}

</mosaic_0001>

<llo_original>
// kernel: tpu_custom_call.1
$region0: #{tpu_custom_call.1}
  #allocation0 [shape = 'u32[]', space=smem, size = 0x4, offset = 0x4, fixed_abs, tag = 'smem constant byte address 0x4 - core index']
  #allocation1 [shape = 'u32[72,128]{1,0:T(1,128)}', space=vmem, size = 0x9000, scoped, tag = 'internal scratch']
  %s0 = inlined_call_operand.vmem [shape: f32[4], index: 0, kind: input, shape index: {}]
  %s1 = inlined_call_operand.vmem [shape: f32[4], index: 1, kind: input, shape index: {}]
  %s2 = inlined_call_operand.hbm [shape: f32[2,4,16,16], index: 2, kind: input, shape index: {}]
  %s3 = inlined_call_operand.vmem [shape: bf16[32,16], index: 3, kind: input, shape index: {}]
  %s4 = inlined_call_operand.vmem [shape: bf16[16,32], index: 4, kind: input, shape index: {}]
  %s5 = inlined_call_operand.hbm [shape: f32[2,4,32,32], index: 5, kind: output, shape index: {}]
  %s6 = sld [smem:[#allocation0]]
  $region65: #{tpu_custom_call.1} parent=0
    _
  %s8 = ssub.s32 1, %s6
  %s9 = scalar_select 0, %s8, %s6
  $region1: #{tpu_custom_call.1} parent=0
    #allocation2 [shape = 'u8[512]{0}', space=smem, size = 0x200, scoped, tag = 'input window, operand 0, single buffered']
    #allocation3 [shape = 's32[2]{0}', space=sflag, size = 0x8, scoped, tag = 'scoped memory for tpu_custom_call.1']
    #allocation4 [shape = 's32[2]{0}', space=sflag, size = 0x8, scoped, tag = 'scoped memory for tpu_custom_call.1']
    #allocation5 [shape = 's32[2]{0}', space=sflag, size = 0x8, scoped, tag = 'scoped memory for tpu_custom_call.1']
    #allocation6 [shape = 'u8[512]{0}', space=smem, size = 0x200, scoped, tag = 'input window, operand 1, single buffered']
    #allocation7 [shape = 's32[1]{0}', space=sflag, size = 0x4, scoped, tag = 'scoped memory for tpu_custom_call.1']
    #allocation8 [shape = 'u8[16384]{0}', space=vmem, size = 0x4000, scoped, tag = 'input window, operand 2']
    #allocation9 [shape = 'u8[32768]{0}', space=vmem, size = 0x8000, scoped, tag = 'output window, operand 0']
    %10 = vsyncpa [#allocation5], 0
    %11 = vsyncpa [#allocation7], 0
    %12 = vsyncpa [#allocation3], 0
    %s13 = scalar_lea.sflag [#allocation3], 1
    %14 = vsyncpa %s13, 0
    %15 = vsyncpa [#allocation4], 0
    %s16 = scalar_lea.sflag [#allocation4], 1
    %17 = vsyncpa %s16, 0
    loop: start=0, step=1, limit=10
    $region2: #{tpu_custom_call.1} parent=1 // loop_pre_header
      _
    $region3: #{tpu_custom_call.1} parent=1 // loop_header
      %s19 = sphi 0, %s23
      %p20 = scmp.ge.s32.totalorder %s19, 10
      %s26 = sphi 0, %s38
      %s27 = sphi 0, %s34
      %s28 = sphi 0, %s26
      %s29 = sphi 0, %s27
      %s30 = sphi 0, %s28
      %s31 = sphi 0, %s29
      %s39 = sphi 0, %s39
      %s41 = sphi 0, %s39
      %s42 = sphi 0, %s41
      %s56 = sphi 0, %s42
      %s60 = sphi 0, %s60
      %s62 = sphi 0, %s60
      %s63 = sphi 0, %s62
      %s77 = sphi 0, %s63
      %s85 = sphi 0, %s87
      %s88 = sphi 0, %s85
      %s89 = sphi 0, %s88
      %s105 = sphi 0, %s89
      %s109 = sphi 0, %s109
      %s111 = sphi 0, %s109
      %s112 = sphi 0, %s111
      %s126 = sphi 0, %s112
      %s130 = sphi 0, %s130
      %s132 = sphi 0, %s130
      %s133 = sphi 0, %s132
      %s147 = sphi 0, %s133
      %s155 = sphi 0, %s157
      %s158 = sphi 0, %s155
      %s159 = sphi 0, %s158
      %s175 = sphi 0, %s159
    $region4: #{tpu_custom_call.1} parent=1 // loop_header_branch
      %22 = sbr.rel (%p20) target = $region8
    $region5: #{tpu_custom_call.1} parent=1 // loop_body
      %s24 = ssub.s32 %s19, 1
      %s25 = ssub.s32 %s19, 2
      %s32 = sadd.s32 1, %s27
      %p33 = scmp.ge.s32.totalorder %s32, 4
      %s34 = scalar_select %p33, 0, %s32
      %s35 = sadd.s32 1, %s26
      %s36 = scalar_select %p33, %s35, %s26
      %p37 = scmp.ge.s32.totalorder %s36, 2
      %s38 = scalar_select %p37, 0, %s36
      %s40 = sadd.s32 %s39, 1
      %p43 = scmp.eq.s32.totalorder %s19, 7
      %p44 = scmp.ne.s32.totalorder %s39, %s41
      %p45 = scmp.eq.s32.totalorder %s19, 0
      %p46 = por %p44, %p45
      %p47 = scmp.ne.s32.totalorder %s39, %s41
      %p48 = scmp.eq.s32.totalorder %s24, 7
      %p49 = por %p47, %p48
      %p50 = scmp.ne.s32.totalorder %s41, %s42
      %p51 = scmp.eq.s32.totalorder %s24, 0
      %p52 = por %p50, %p51
      %p53 = scmp.ne.s32.totalorder %s41, %s42
      %p54 = scmp.eq.s32.totalorder %s25, 7
      %p55 = por %p53, %p54
      %p57 = scmp.ne.s32.totalorder %s42, %s56
      %p58 = scmp.eq.s32.totalorder %s25, 0
      %p59 = por %p57, %p58
      %s61 = sadd.s32 %s60, 1
      %p64 = scmp.eq.s32.totalorder %s19, 7
      %p65 = scmp.ne.s32.totalorder %s60, %s62
      %p66 = scmp.eq.s32.totalorder %s19, 0
      %p67 = por %p65, %p66
      %p68 = scmp.ne.s32.totalorder %s60, %s62
      %p69 = scmp.eq.s32.totalorder %s24, 7
      %p70 = por %p68, %p69
      %p71 = scmp.ne.s32.totalorder %s62, %s63
      %p72 = scmp.eq.s32.totalorder %s24, 0
      %p73 = por %p71, %p72
      %p74 = scmp.ne.s32.totalorder %s62, %s63
      %p75 = scmp.eq.s32.totalorder %s25, 7
      %p76 = por %p74, %p75
      %p78 = scmp.ne.s32.totalorder %s63, %s77
      %p79 = scmp.eq.s32.totalorder %s25, 0
      %p80 = por %p78, %p79
      %s81 = ssub.s32 %s26, %s38
      %s82 = ssub.s32 %s27, %s34
      %s83 = sor.u32 %s81, %s82
      %p84 = scmp.eq.s32.totalorder %s83, 0
      %s86 = sadd.s32 %s85, 1
      %s87 = scalar_select %p84, %s85, %s86
      %p90 = pneg %p84
      %p91 = scmp.eq.s32.totalorder %s19, 7
      %p92 = por %p90, %p91
      %p93 = scmp.ne.s32.totalorder %s85, %s88
      %p94 = scmp.eq.s32.totalorder %s19, 0
      %p95 = por %p93, %p94
      %p96 = scmp.ne.s32.totalorder %s85, %s88
      %p97 = scmp.eq.s32.totalorder %s24, 7
      %p98 = por %p96, %p97
      %p99 = scmp.ne.s32.totalorder %s88, %s89
      %p100 = scmp.eq.s32.totalorder %s24, 0
      %p101 = por %p99, %p100
      %p102 = scmp.ne.s32.totalorder %s88, %s89
      %p103 = scmp.eq.s32.totalorder %s25, 7
      %p104 = por %p102, %p103
      %p106 = scmp.ne.s32.totalorder %s89, %s105
      %p107 = scmp.eq.s32.totalorder %s25, 0
      %p108 = por %p106, %p107
      %s110 = sadd.s32 %s109, 1
      %p113 = scmp.eq.s32.totalorder %s19, 7
      %p114 = scmp.ne.s32.totalorder %s109, %s111
      %p115 = scmp.eq.s32.totalorder %s19, 0
      %p116 = por %p114, %p115
      %p117 = scmp.ne.s32.totalorder %s109, %s111
      %p118 = scmp.eq.s32.totalorder %s24, 7
      %p119 = por %p117, %p118
      %p120 = scmp.ne.s32.totalorder %s111, %s112
      %p121 = scmp.eq.s32.totalorder %s24, 0
      %p122 = por %p120, %p121
      %p123 = scmp.ne.s32.totalorder %s111, %s112
      %p124 = scmp.eq.s32.totalorder %s25, 7
      %p125 = por %p123, %p124
      %p127 = scmp.ne.s32.totalorder %s112, %s126
      %p128 = scmp.eq.s32.totalorder %s25, 0
      %p129 = por %p127, %p128
      %s131 = sadd.s32 %s130, 1
      %p134 = scmp.eq.s32.totalorder %s19, 7
      %p135 = scmp.ne.s32.totalorder %s130, %s132
      %p136 = scmp.eq.s32.totalorder %s19, 0
      %p137 = por %p135, %p136
      %p138 = scmp.ne.s32.totalorder %s130, %s132
      %p139 = scmp.eq.s32.totalorder %s24, 7
      %p140 = por %p138, %p139
      %p141 = scmp.ne.s32.totalorder %s132, %s133
      %p142 = scmp.eq.s32.totalorder %s24, 0
      %p143 = por %p141, %p142
      %p144 = scmp.ne.s32.totalorder %s132, %s133
      %p145 = scmp.eq.s32.totalorder %s25, 7
      %p146 = por %p144, %p145
      %p148 = scmp.ne.s32.totalorder %s133, %s147
      %p149 = scmp.eq.s32.totalorder %s25, 0
      %p150 = por %p148, %p149
      %s151 = ssub.s32 %s26, %s38
      %s152 = ssub.s32 %s27, %s34
      %s153 = sor.u32 %s151, %s152
      %p154 = scmp.eq.s32.totalorder %s153, 0
      %s156 = sadd.s32 %s155, 1
      %s157 = scalar_select %p154, %s155, %s156
      %p160 = pneg %p154
      %p161 = scmp.eq.s32.totalorder %s19, 7
      %p162 = por %p160, %p161
      %p163 = scmp.ne.s32.totalorder %s155, %s158
      %p164 = scmp.eq.s32.totalorder %s19, 0
      %p165 = por %p163, %p164
      %p166 = scmp.ne.s32.totalorder %s155, %s158
      %p167 = scmp.eq.s32.totalorder %s24, 7
      %p168 = por %p166, %p167
      %p169 = scmp.ne.s32.totalorder %s158, %s159
      %p170 = scmp.eq.s32.totalorder %s24, 0
      %p171 = por %p169, %p170
      %p172 = scmp.ne.s32.totalorder %s158, %s159
      %p173 = scmp.eq.s32.totalorder %s25, 7
      %p174 = por %p172, %p173
      %p176 = scmp.ne.s32.totalorder %s159, %s175
      %p177 = scmp.eq.s32.totalorder %s25, 0
      %p178 = por %p176, %p177
      %p179 = scmp.le.s32.totalorder 1, %s19
      %p180 = scmp.lt.s32.totalorder %s19, 9
      %p181 = pnand %p179, %p180
      %p182 = pneg %p181
      // Predicated region
      $region9: #{tpu_custom_call.1} parent=5 // pred_check
        _
      $region10: #{tpu_custom_call.1} parent=5 // pred_check_branch
        %184 = sbr.rel (%p181) target = $region12
      $region11: #{tpu_custom_call.1} parent=5 // pred_region
        %s185 = ssub.s32 %s19, 1
        // Predicated region
        $region13: #{tpu_custom_call.1} parent=11 // pred_check
          %p186 = pneg %p52
        $region14: #{tpu_custom_call.1} parent=11 // pred_check_branch
          %188 = sbr.rel (%p186) target = $region16
        $region15: #{tpu_custom_call.1} parent=11 // pred_region
          %190 = vsyncadd [#allocation5], 0
          %s192 = sshll.u32 %s0, 4
          %s193 = int_to_ptr.vmem [resolvable:$true] %s192
          %195 = dma.vmem_to_smem %s193, 16, [#allocation2], [#allocation5]
        $region16: #{tpu_custom_call.1} parent=11 // pred_fallthru
          _
        // Predicated region
        $region17: #{tpu_custom_call.1} parent=11 // pred_check
          %p196 = pneg %p73
        $region18: #{tpu_custom_call.1} parent=11 // pred_check_branch
          %198 = sbr.rel (%p196) target = $region20
        $region19: #{tpu_custom_call.1} parent=11 // pred_region
          %200 = vsyncadd [#allocation7], 0
          %s202 = sshll.u32 %s1, 4
          %s203 = int_to_ptr.vmem [resolvable:$true] %s202
          %205 = dma.vmem_to_smem %s203, 16, [#allocation6], [#allocation7]
        $region20: #{tpu_custom_call.1} parent=11 // pred_fallthru
          _
        // Predicated region
        $region21: #{tpu_custom_call.1} parent=11 // pred_check
          %p206 = pneg %p122
        $region22: #{tpu_custom_call.1} parent=11 // pred_check_branch
          %208 = sbr.rel (%p206) target = $region24
        $region23: #{tpu_custom_call.1} parent=11 // pred_region
          _
        $region24: #{tpu_custom_call.1} parent=11 // pred_fallthru
          _
        // Predicated region
        $region25: #{tpu_custom_call.1} parent=11 // pred_check
          %p209 = pneg %p143
        $region26: #{tpu_custom_call.1} parent=11 // pred_check_branch
          %211 = sbr.rel (%p209) target = $region28
        $region27: #{tpu_custom_call.1} parent=11 // pred_region
          _
        $region28: #{tpu_custom_call.1} parent=11 // pred_fallthru
          _
      $region12: #{tpu_custom_call.1} parent=5 // pred_fallthru
        _
      %p212 = scmp.lt.s32.totalorder %s19, 8
      // Predicated region
      $region29: #{tpu_custom_call.1} parent=5 // pred_check
        %p213 = pneg %p212
      $region30: #{tpu_custom_call.1} parent=5 // pred_check_branch
        %215 = sbr.rel (%p213) target = $region32
      $region31: #{tpu_custom_call.1} parent=5 // pred_region
        // Predicated region
        $region33: #{tpu_custom_call.1} parent=31 // pred_check
          %p216 = pneg %p95
        $region34: #{tpu_custom_call.1} parent=31 // pred_check_branch
          %218 = sbr.rel (%p216) target = $region36
        $region35: #{tpu_custom_call.1} parent=31 // pred_region
          %s219 = sand.u32 %s85, 1
          %s220 = scalar_lea.sflag [#allocation3], %s219
          %s221 = sand.u32 %s85, 1
          %s222 = smul.addr %s221, 16
          %s223 = scalar_lea.vmem [#allocation8], %s222
          %225 = vsyncadd %s220, 0
          %s226 = smul.addr %s27, 2
          %s227 = smul.addr %s26, 8
          %s228 = sadd.s32 %s226, %s227
          %s229 = smul.addr %s228, 8
          %s230 = scalar_lea.hbm %s2, %s229
          %s231 = sshll.u32 %s230, 4
          %s232 = int_to_ptr.hbm [resolvable:$true] %s231
          %s233 = sshll.u32 %s223, 4
          %s234 = int_to_ptr.vmem [resolvable:$true] %s233
          %239 = dma.hbm_to_vmem [thread:$0]  %s232, 256, %s234, %s220, 128, 128, 8
        $region36: #{tpu_custom_call.1} parent=31 // pred_fallthru
          _
      $region32: #{tpu_custom_call.1} parent=5 // pred_fallthru
        _
      %p240 = scmp.le.s32.totalorder 1, %s19
      %p241 = scmp.lt.s32.totalorder %s19, 9
      %p242 = pnand %p240, %p241
      %p243 = pneg %p242
      // Predicated region
      $region37: #{tpu_custom_call.1} parent=5 // pred_check
        _
      $region38: #{tpu_custom_call.1} parent=5 // pred_check_branch
        %245 = sbr.rel (%p242) target = $region40
      $region39: #{tpu_custom_call.1} parent=5 // pred_region
        %s246 = ssub.s32 %s19, 1
        // Predicated region
        $region41: #{tpu_custom_call.1} parent=39 // pred_check
          %p247 = pneg %p52
        $region42: #{tpu_custom_call.1} parent=39 // pred_check_branch
          %249 = sbr.rel (%p247) target = $region44
        $region43: #{tpu_custom_call.1} parent=39 // pred_region
          %251 = dma.done [#allocation5], 16
        $region44: #{tpu_custom_call.1} parent=39 // pred_fallthru
          _
        // Predicated region
        $region45: #{tpu_custom_call.1} parent=39 // pred_check
          %p252 = pneg %p73
        $region46: #{tpu_custom_call.1} parent=39 // pred_check_branch
          %254 = sbr.rel (%p252) target = $region48
        $region47: #{tpu_custom_call.1} parent=39 // pred_region
          %256 = dma.done [#allocation7], 16
        $region48: #{tpu_custom_call.1} parent=39 // pred_fallthru
          _
        %s257 = sand.u32 %s88, 1
        %s258 = scalar_lea.sflag [#allocation3], %s257
        %s259 = sand.u32 %s88, 1
        %s260 = smul.addr %s259, 16
        %s261 = scalar_lea.vmem [#allocation8], %s260
        // Predicated region
        $region49: #{tpu_custom_call.1} parent=39 // pred_check
          %p262 = pneg %p101
        $region50: #{tpu_custom_call.1} parent=39 // pred_check_branch
          %264 = sbr.rel (%p262) target = $region52
        $region51: #{tpu_custom_call.1} parent=39 // pred_region
          %266 = dma.done %s258, 256
        $region52: #{tpu_custom_call.1} parent=39 // pred_fallthru
          _
        %267 = sfence
        %p268 = pneg %p52
        %p269 = pneg %p49
        %p270 = pneg %p73
        %p271 = pneg %p70
        %s272 = sand.u32 %s88, 1
        %s273 = scalar_lea.sflag [#allocation3], %s272
        %s274 = sand.u32 %s88, 1
        %s275 = smul.addr %s274, 16
        %s276 = scalar_lea.vmem [#allocation8], %s275
        %p277 = pneg %p101
        %p278 = pneg %p98
        %p279 = pneg %p122
        %p280 = pneg %p119
        %p281 = pneg %p143
        %p282 = pneg %p140
        %p283 = pneg %p171
        %p284 = pneg %p168
        %s285 = sand.u32 %s158, 1
        %s286 = scalar_lea.sflag [#allocation4], %s285
        %s287 = sand.u32 %s158, 1
        %s288 = smul.addr %s287, 32
        %s289 = scalar_lea.vmem [#allocation9], %s288
        %v291 = vld [vmem:[%s261] sm:$0xff]
        %v292 = vld [vmem:[%s261 + $0x8] sm:$0xff]
        %v293 = vpack.c.bf16 %v292, %v291
        %v294 = vld [vmem:[%s3] sm:$0xf]
        %v295 = vld [vmem:[%s3 + $0x4] sm:$0xf]
        %v296 = vld [vmem:[%s3 + $0x8] sm:$0xf]
        %v297 = vld [vmem:[%s3 + $0xc] sm:$0xf]
        %v302 = vunpack.c.l.b16 %v294
        %v303 = vunpack.c.l.b16 %v295
        %v304 = vunpack.c.l.b16 %v296
        %v305 = vunpack.c.l.b16 %v297
        %v306 = vpack.c.b16 %v303, %v302
        %v307 = vpack.c.b16 %v305, %v304
        %vm308 = vcmask 130048
        %v310 = vsel %vm308, %v306, 0
        %v313 = vsel %vm308, %v307, 0
        %315 = vmatpush.bf16.msra.mxu0 0
        %316 = vmatpush.bf16.msra.mxu0 0
        %317 = vmatpush.bf16.msra.mxu0 0
        %318 = vmatpush.bf16.msra.mxu0 0
        %319 = vmatpush.bf16.msra.mxu0 0
        %320 = vmatpush.bf16.msra.mxu0 0
        %321 = vmatpush.bf16.msra.mxu0 0
        %322 = vmatpush.bf16.msra.mxu0 %v293
        %323 = vmatmul.bf16.gmra.mxu0 %v310
        %v324 = vpop.f32.mrf.mxu0
        %v325 = vadd.f32 0.0, %v324
        %v326 = vpop.f32.mrf.mxu0
        %v327 = vadd.f32 0.0, %v326
        %328 = vmatmul.bf16.gmra.mxu0 %v313
        %v329 = vpop.f32.mrf.mxu0
        %v330 = vadd.f32 0.0, %v329
        %v331 = vpop.f32.mrf.mxu0
        %v332 = vadd.f32 0.0, %v331
        %333 = vdwg.mxu0
        %v334 = vpack.c.bf16 %v327, %v325
        %v335 = vpack.c.bf16 %v332, %v330
        %v336 = vld [vmem:[%s4] sm:$0xf]
        %v337 = vld [vmem:[%s4 + $0x4] sm:$0xf]
        %v340 = vunpack.c.l.b16 %v336
        %v341 = vunpack.c.l.b16 %v337
        %v342 = vpack.c.b16 %v341, %v340
        %v345 = vsel %vm308, %v334, 0
        %v348 = vsel %vm308, %v335, 0
        %350 = vmatpush.bf16.msra.mxu0 0
        %351 = vmatpush.bf16.msra.mxu0 0
        %352 = vmatpush.bf16.msra.mxu0 0
        %353 = vmatpush.bf16.msra.mxu0 0
        %354 = vmatpush.bf16.msra.mxu0 0
        %355 = vmatpush.bf16.msra.mxu0 0
        %356 = vmatpush.bf16.msra.mxu0 0
        %357 = vmatpush.bf16.msra.mxu0 %v342
        %358 = vmatmul.bf16.gmra.mxu0 %v345
        %v359 = vpop.f32.mrf.mxu0
        %v360 = vadd.f32 0.0, %v359
        %v361 = vpop.f32.mrf.mxu0
        %v362 = vadd.f32 0.0, %v361
        %363 = vmatmul.bf16.gmra.mxu0 %v348
        %v364 = vpop.f32.mrf.mxu0
        %v365 = vadd.f32 0.0, %v364
        %v366 = vpop.f32.mrf.mxu0
        %v367 = vadd.f32 0.0, %v366
        %368 = vdwg.mxu0
        %v369 = vlaneseq
        %v370 = vshrl.u32 %v369, 7
        %v371 = vadd.s32 %v370, 8
        %v372 = vadd.s32 %v370, 16
        %v373 = vadd.s32 %v370, 24
        %v374 = vlaneseq
        %v375 = vand.u32 %v374, 127
        %vm376 = vcmp.lt.s32.totalorder %v370, 8
        %vm377 = vcmp.lt.s32.totalorder %v371, 8
        %vm378 = vcmp.lt.s32.totalorder %v372, 8
        %vm379 = vcmp.lt.s32.totalorder %v373, 8
        %vm380 = vcmp.lt.s32.totalorder %v375, 8
        %vm381 = vmand %vm376, %vm380
        %vm382 = vmand %vm377, %vm380
        %vm383 = vmand %vm378, %vm380
        %vm384 = vmand %vm379, %vm380
        %s385 = sld [smem:[#allocation2 + %s29]]
        %v386 = vstv %s385
        %v387 = vmul.f32 %v360, %v386
        %v388 = vmul.f32 %v362, %v386
        %v389 = vmul.f32 %v365, %v386
        %v390 = vmul.f32 %v367, %v386
        %s391 = sld [smem:[#allocation6 + %s29]]
        %v392 = vstv %s391
        %v393 = vadd.f32 %v387, %v392
        %v394 = vadd.f32 %v388, %v392
        %v395 = vadd.f32 %v389, %v392
        %v396 = vadd.f32 %v390, %v392
        %v397 = vsel %vm381, %v393, 0.0
        %v398 = vsel %vm382, %v394, 0.0
        %v399 = vsel %vm383, %v395, 0.0
        %v400 = vsel %vm384, %v396, 0.0
        %vm401 = vcmask 261120
        %402 = vst.msk [vmem:[%s289] sm:$0xff] %vm401, %v397
        %403 = vst.msk [vmem:[%s289 + $0x8] sm:$0xff] %vm401, %v398
        %404 = vst.msk [vmem:[%s289 + $0x10] sm:$0xff] %vm401, %v399
        %405 = vst.msk [vmem:[%s289 + $0x18] sm:$0xff] %vm401, %v400
        %s406 = sand.u32 %s158, 1
        %s407 = scalar_lea.sflag [#allocation4], %s406
        %s408 = sand.u32 %s158, 1
        %s409 = smul.addr %s408, 32
        %s410 = scalar_lea.vmem [#allocation9], %s409
        // Predicated region
        $region53: #{tpu_custom_call.1} parent=39 // pred_check
          %p411 = pneg %p168
        $region54: #{tpu_custom_call.1} parent=39 // pred_check_branch
          %413 = sbr.rel (%p411) target = $region56
        $region55: #{tpu_custom_call.1} parent=39 // pred_region
          %415 = vsyncadd %s407, 0
          %s416 = smul.addr %s29, 4
          %s417 = smul.addr %s28, 16
          %s418 = sadd.s32 %s416, %s417
          %s419 = smul.addr %s418, 8
          %s420 = scalar_lea.hbm %s5, %s419
          %s421 = sshll.u32 %s410, 4
          %s422 = int_to_ptr.vmem [resolvable:$true] %s421
          %s423 = sshll.u32 %s420, 4
          %s424 = int_to_ptr.hbm [resolvable:$true] %s423
          %429 = dma.vmem_to_hbm [thread:$0]  %s422, 512, %s424, %s407, 128, 128, 8
        $region56: #{tpu_custom_call.1} parent=39 // pred_fallthru
          _
      $region40: #{tpu_custom_call.1} parent=5 // pred_fallthru
        _
      %p430 = scmp.le.s32.totalorder 2, %s19
      // Predicated region
      $region57: #{tpu_custom_call.1} parent=5 // pred_check
        %p431 = pneg %p430
      $region58: #{tpu_custom_call.1} parent=5 // pred_check_branch
        %433 = sbr.rel (%p431) target = $region60
      $region59: #{tpu_custom_call.1} parent=5 // pred_region
        %s434 = ssub.s32 %s19, 2
        // Predicated region
        $region61: #{tpu_custom_call.1} parent=59 // pred_check
          %p435 = pneg %p174
        $region62: #{tpu_custom_call.1} parent=59 // pred_check_branch
          %437 = sbr.rel (%p435) target = $region64
        $region63: #{tpu_custom_call.1} parent=59 // pred_region
          %s438 = sand.u32 %s159, 1
          %s439 = scalar_lea.sflag [#allocation4], %s438
          %s440 = sand.u32 %s159, 1
          %s441 = smul.addr %s440, 32
          %s442 = scalar_lea.vmem [#allocation9], %s441
          %444 = dma.done %s439, 512
        $region64: #{tpu_custom_call.1} parent=59 // pred_fallthru
          _
      $region60: #{tpu_custom_call.1} parent=5 // pred_fallthru
        _
    $region6: #{tpu_custom_call.1} parent=1 // loop_footer
      %s23 = sadd.s32 1, %s19
    $region7: #{tpu_custom_call.1} parent=1 // loop_footer_branch
      %18 = sbr.rel target = $region3
    $region8: #{tpu_custom_call.1} parent=1 // loop_exit
      _
    %445 = vsyncpa [#allocation3], 1
    %s446 = scalar_lea.sflag [#allocation3], 1
    %447 = vsyncpa %s446, 1
    %448 = vsyncpa [#allocation4], 1
    %s449 = scalar_lea.sflag [#allocation4], 1
    %450 = vsyncpa %s449, 1
    %451 = vsyncpa [#allocation5], 1
    %s452 = scalar_lea.sflag [#allocation5], 1
    %453 = vsyncpa %s452, 1
    %454 = vsyncpa [#allocation7], 1

</llo_original>
